<compile_context>
chip_gen: v7x
topology: tpu7x:2x2x1
jax: 0.10.0
libtpu: 0.0.40
codegen_flags: <defaults>
</compile_context>

<pallas_src>
import functools

import jax
import jax.numpy as jnp
import numpy as np
from jax import lax
from jax.experimental import pallas as pl
from jax.experimental.pallas import tpu as pltpu

EPS = 1e-5
NEG_SLOPE = 0.2
NUM_GROUPS = 2


def _convsc_kernel(x_ref, w_ref, p_ref, o_ref, *, TN, H, W, C_in, C_out):
    # x_ref: (TN, H+2, W*C_in)      H-padded, lane-flattened input
    # w_ref: (3, W*C_in, W*C_out)   block-Toeplitz conv weights (one per dy)
    # p_ref: (4, W*C_out)           rows: [bias, gamma, beta, group0-mask]
    # o_ref: (TN, H, W*C_out)       lane-dense output
    Kdim = W * C_in
    WCo = W * C_out

    bias = p_ref[0:1, :]          # (1, WCo)
    gamma = p_ref[1:2, :]
    beta = p_ref[2:3, :]
    m0 = p_ref[3:4, :]            # 1.0 on lanes belonging to channel group 0
    m1 = 1.0 - m0

    # 3x3 conv == 3 MXU matmuls; dx shift + W zero-padding are baked into the
    # Toeplitz weight, so no in-kernel lane relayouts are needed.
    x = x_ref[...]                                            # (TN, H+2, Kdim)
    acc = jnp.zeros((TN * H, WCo), dtype=jnp.float32)
    for dy in range(3):
        xs = x[:, dy:dy + H, :].reshape(TN * H, Kdim)
        acc = acc + jnp.dot(xs, w_ref[dy], preferred_element_type=jnp.float32)
    acc = acc + bias

    # GroupNorm(2 groups) + affine + LeakyReLU per batch item via lane masks.
    # Group-1 stats come from (full sum - group-0 sum): 2 reductions per pass
    # instead of 4.
    inv_cnt = 1.0 / float(H * W * (C_out // NUM_GROUPS))
    for n in range(TN):
        y = acc[n * H:(n + 1) * H, :]                         # (H, WCo)
        s_all = jnp.sum(y)
        s0 = jnp.sum(y * m0)
        mu0 = s0 * inv_cnt
        mu1 = (s_all - s0) * inv_cnt
        mean = mu0 * m0 + mu1 * m1                            # (1, WCo)
        d = y - mean
        dd = d * d
        t_all = jnp.sum(dd)
        t0 = jnp.sum(dd * m0)
        v0 = t0 * inv_cnt
        v1 = (t_all - t0) * inv_cnt
        rstd = lax.rsqrt(v0 + EPS) * m0 + lax.rsqrt(v1 + EPS) * m1   # (1, WCo)
        a = gamma * rstd
        b = beta - mean * a
        yn = y * a + b
        o_ref[n] = jnp.where(yn > 0, yn, NEG_SLOPE * yn)


def _build_toeplitz_weights(w_oihw, W):
    """(C_out, C_in, 3, 3) OIHW -> (3, W*C_in, W*C_out) block-Toeplitz.

    The dx shift and the zero-padding of the W border are encoded directly:
    column block w only receives contributions from input columns w-1, w, w+1
    that lie inside [0, W).
    """
    C_out, C_in, KH, KW = w_oihw.shape
    w_hwio = jnp.transpose(w_oihw, (2, 3, 1, 0))              # (KH, KW, C_in, C_out)
    w_big = jnp.zeros((KH, W * C_in, W * C_out), dtype=jnp.float32)
    for w in range(W):
        for dx in range(KW):
            src = w + dx - 1                                  # input column
            if 0 <= src < W:
                w_big = w_big.at[:, src * C_in:(src + 1) * C_in,
                                 w * C_out:(w + 1) * C_out].set(w_hwio[:, dx])
    return w_big


def _pick_tn(N, H, W, C_in, C_out, budget_bytes=4 * 1024 * 1024, max_tn=8):
    """Largest divisor of N whose double-buffered block fits a small VMEM budget."""
    per_item = ((H + 2) * W * C_in + H * W * C_out) * 4
    tn = 1
    for cand in range(1, min(N, max_tn) + 1):
        if N % cand == 0 and 2 * cand * per_item <= budget_bytes:
            tn = cand
    return tn


def convsc_forward(x_nchw, w_oihw, b, gamma, beta):
    """ConvSC forward. x_nchw: (N, C_in, H, W) f32. Returns (N, C_out, H, W)."""
    N, C_in, H, W = x_nchw.shape
    C_out = w_oihw.shape[0]
    WCo = W * C_out
    Kdim = W * C_in

    # Glue: NCHW -> H-padded, lane-flattened rows (N, H+2, W*C_in).
    # TODO(synk): in a stacked ConvSC network, keep this lane-dense layout
    # end-to-end to avoid the transpose here and the transpose back below.
    x_nhwc = jnp.transpose(x_nchw, (0, 2, 3, 1))
    x_pad = jnp.pad(x_nhwc, ((0, 0), (1, 1), (0, 0), (0, 0)))
    x_flat = x_pad.reshape(N, H + 2, Kdim)

    w_big = _build_toeplitz_weights(w_oihw, W)

    # Merge bias / gamma / beta / group-0 mask into one lane-tiled params array.
    ch = jnp.tile(jnp.arange(C_out), W)
    params = jnp.stack([
        jnp.tile(b, W),
        jnp.tile(gamma, W),
        jnp.tile(beta, W),
        (ch < (C_out // NUM_GROUPS)).astype(jnp.float32),
    ], axis=0)                                                # (4, W*C_out)

    TN = _pick_tn(N, H, W, C_in, C_out)
    kernel = functools.partial(_convsc_kernel, TN=TN, H=H, W=W,
                               C_in=C_in, C_out=C_out)

    out_flat = pl.pallas_call(
        kernel,
        out_shape=jax.ShapeDtypeStruct((N, H, WCo), jnp.float32),
        grid_spec=pltpu.PrefetchScalarGridSpec(
            num_scalar_prefetch=0,
            grid=(N // TN,),
            in_specs=[
                pl.BlockSpec((TN, H + 2, Kdim), lambda i: (i, 0, 0)),
                pl.BlockSpec((3, Kdim, WCo), lambda i: (0, 0, 0)),
                pl.BlockSpec((4, WCo), lambda i: (0, 0)),
            ],
            out_specs=pl.BlockSpec((TN, H, WCo), lambda i: (i, 0, 0)),
        ),
        compiler_params=pltpu.CompilerParams(
            dimension_semantics=("parallel",)),
    )(x_flat, w_big, params)

    # (N, H, W*C_out) -> NCHW
    return jnp.transpose(out_flat.reshape(N, H, W, C_out), (0, 3, 1, 2))


def convsc_reference(x_nchw, w_oihw, b, gamma, beta):
    """Plain-JAX reference (conv + groupnorm + leakyrelu) for verification."""
    y = lax.conv_general_dilated(
        x_nchw, w_oihw, window_strides=(1, 1), padding=((1, 1), (1, 1)),
        dimension_numbers=("NCHW", "OIHW", "NCHW"))
    y = y + b.reshape(1, -1, 1, 1)
    N, C, H, W = y.shape
    yg = y.reshape(N, NUM_GROUPS, C // NUM_GROUPS, H, W)
    m = jnp.mean(yg, axis=(2, 3, 4), keepdims=True)
    v = jnp.mean((yg - m) ** 2, axis=(2, 3, 4), keepdims=True)
    yn = ((yg - m) / jnp.sqrt(v + EPS)).reshape(N, C, H, W)
    yn = yn * gamma.reshape(1, -1, 1, 1) + beta.reshape(1, -1, 1, 1)
    return jnp.where(yn > 0, yn, NEG_SLOPE * yn)


if __name__ == "__main__":
    # Small shapes consistent with ConvSC(C_in=4, C_out=8, stride=1).
    N, C_in, C_out, H, W = 2, 4, 8, 16, 16

    key = jax.random.PRNGKey(0)
    kx, kw, kb, kg, kbt = jax.random.split(key, 5)

    x = jax.random.normal(kx, (N, C_in, H, W), dtype=jnp.float32)
    fan_in = C_in * 3 * 3
    w = jax.random.normal(kw, (C_out, C_in, 3, 3), dtype=jnp.float32) / np.sqrt(fan_in)
    b = jax.random.normal(kb, (C_out,), dtype=jnp.float32) * 0.1
    gamma = 1.0 + 0.1 * jax.random.normal(kg, (C_out,), dtype=jnp.float32)
    beta = 0.1 * jax.random.normal(kbt, (C_out,), dtype=jnp.float32)

    out = convsc_forward(x, w, b, gamma, beta)
    out = jax.block_until_ready(out)

    ref = jax.block_until_ready(convsc_reference(x, w, b, gamma, beta))
    np.testing.assert_allclose(np.asarray(out), np.asarray(ref), rtol=1e-4, atol=1e-4)

    print("KERNEL_OK")
</pallas_src>

<mosaic_0001>
module attributes {stable_mosaic.version = 11 : i64} {
  func.func @_convsc_kernel(%arg0: i32, %arg1: memref<2x18x64xf32, #tpu.memory_space<vmem>>, %arg2: memref<3x64x128xf32, #tpu.memory_space<vmem>>, %arg3: memref<4x128xf32, #tpu.memory_space<vmem>>, %arg4: memref<2x16x128xf32, #tpu.memory_space<vmem>>) attributes {dimension_semantics = [#tpu.dimension_semantics<parallel>], iteration_bounds = array<i64: 1>, scalar_prefetch = 0 : i64, scratch_operands = 0 : i64, tpu.core_type = #tpu.core_type<tc>, window_params = [{transform_indices = @transform_0, window_bounds = array<i64: 2, 18, 64>}, {pipeline_mode = #tpu.pipeline_mode<synchronous>, transform_indices = @transform_1, window_bounds = array<i64: 3, 64, 128>}, {pipeline_mode = #tpu.pipeline_mode<synchronous>, transform_indices = @transform_2, window_bounds = array<i64: 4, 128>}, {transform_indices = @transform_3, window_bounds = array<i64: 2, 16, 128>}]} {
    %c0 = arith.constant 0 : index
    %c0_0 = arith.constant 0 : index
    %0 = vector.load %arg3[%c0, %c0_0] : memref<4x128xf32, #tpu.memory_space<vmem>>, vector<1x128xf32>
    %c1 = arith.constant 1 : index
    %c0_1 = arith.constant 0 : index
    %1 = vector.load %arg3[%c1, %c0_1] : memref<4x128xf32, #tpu.memory_space<vmem>>, vector<1x128xf32>
    %c2 = arith.constant 2 : index
    %c0_2 = arith.constant 0 : index
    %2 = vector.load %arg3[%c2, %c0_2] : memref<4x128xf32, #tpu.memory_space<vmem>>, vector<1x128xf32>
    %c3 = arith.constant 3 : index
    %c0_3 = arith.constant 0 : index
    %3 = vector.load %arg3[%c3, %c0_3] : memref<4x128xf32, #tpu.memory_space<vmem>>, vector<1x128xf32>
    %cst = arith.constant 1.000000e+00 : f32
    %4 = vector.broadcast %cst : f32 to vector<1x128xf32>
    %5 = arith.subf %4, %3 : vector<1x128xf32>
    %c0_4 = arith.constant 0 : index
    %c0_5 = arith.constant 0 : index
    %c0_6 = arith.constant 0 : index
    %6 = vector.load %arg1[%c0_4, %c0_5, %c0_6] : memref<2x18x64xf32, #tpu.memory_space<vmem>>, vector<2x18x64xf32>
    %cst_7 = arith.constant 0.000000e+00 : f32
    %7 = vector.broadcast %cst_7 : f32 to vector<32x128xf32>
    %8 = vector.extract_strided_slice %6 {offsets = [0, 0, 0], sizes = [2, 16, 64], strides = [1, 1, 1]} : vector<2x18x64xf32> to vector<2x16x64xf32>
    %9 = vector.shape_cast %8 : vector<2x16x64xf32> to vector<32x64xf32>
    %c0_8 = arith.constant 0 : index
    %c0_9 = arith.constant 0 : index
    %c0_10 = arith.constant 0 : index
    %10 = vector.load %arg2[%c0_8, %c0_9, %c0_10] : memref<3x64x128xf32, #tpu.memory_space<vmem>>, vector<1x64x128xf32>
    %11 = vector.shape_cast %10 : vector<1x64x128xf32> to vector<64x128xf32>
    %cst_11 = arith.constant dense<0.000000e+00> : vector<32x128xf32>
    %12 = tpu.matmul %9, %11, %cst_11 {dimension_numbers = #tpu.dot_dimension_numbers<[1], [0], [0], [1], [0, 0, 1, 1], [], []>} : vector<32x64xf32>, vector<64x128xf32>, vector<32x128xf32> -> vector<32x128xf32>
    %13 = arith.addf %7, %12 : vector<32x128xf32>
    %14 = vector.extract_strided_slice %6 {offsets = [0, 1, 0], sizes = [2, 16, 64], strides = [1, 1, 1]} : vector<2x18x64xf32> to vector<2x16x64xf32>
    %15 = vector.shape_cast %14 : vector<2x16x64xf32> to vector<32x64xf32>
    %c1_12 = arith.constant 1 : index
    %c0_13 = arith.constant 0 : index
    %c0_14 = arith.constant 0 : index
    %16 = vector.load %arg2[%c1_12, %c0_13, %c0_14] : memref<3x64x128xf32, #tpu.memory_space<vmem>>, vector<1x64x128xf32>
    %17 = vector.shape_cast %16 : vector<1x64x128xf32> to vector<64x128xf32>
    %cst_15 = arith.constant dense<0.000000e+00> : vector<32x128xf32>
    %18 = tpu.matmul %15, %17, %cst_15 {dimension_numbers = #tpu.dot_dimension_numbers<[1], [0], [0], [1], [0, 0, 1, 1], [], []>} : vector<32x64xf32>, vector<64x128xf32>, vector<32x128xf32> -> vector<32x128xf32>
    %19 = arith.addf %13, %18 : vector<32x128xf32>
    %20 = vector.extract_strided_slice %6 {offsets = [0, 2, 0], sizes = [2, 16, 64], strides = [1, 1, 1]} : vector<2x18x64xf32> to vector<2x16x64xf32>
    %21 = vector.shape_cast %20 : vector<2x16x64xf32> to vector<32x64xf32>
    %c2_16 = arith.constant 2 : index
    %c0_17 = arith.constant 0 : index
    %c0_18 = arith.constant 0 : index
    %22 = vector.load %arg2[%c2_16, %c0_17, %c0_18] : memref<3x64x128xf32, #tpu.memory_space<vmem>>, vector<1x64x128xf32>
    %23 = vector.shape_cast %22 : vector<1x64x128xf32> to vector<64x128xf32>
    %cst_19 = arith.constant dense<0.000000e+00> : vector<32x128xf32>
    %24 = tpu.matmul %21, %23, %cst_19 {dimension_numbers = #tpu.dot_dimension_numbers<[1], [0], [0], [1], [0, 0, 1, 1], [], []>} : vector<32x64xf32>, vector<64x128xf32>, vector<32x128xf32> -> vector<32x128xf32>
    %25 = arith.addf %19, %24 : vector<32x128xf32>
    %26 = vector.broadcast %0 : vector<1x128xf32> to vector<32x128xf32>
    %27 = arith.addf %25, %26 : vector<32x128xf32>
    %28 = vector.extract_strided_slice %27 {offsets = [0, 0], sizes = [16, 128], strides = [1, 1]} : vector<32x128xf32> to vector<16x128xf32>
    %29 = vector.shape_cast %28 : vector<16x128xf32> to vector<1x16x128xf32>
    %cst_20 = arith.constant dense<0.000000e+00> : vector<1xf32>
    %30 = vector.multi_reduction <add>, %29, %cst_20 [1, 2] : vector<1x16x128xf32> to vector<1xf32>
    %31 = vector.shape_cast %30 : vector<1xf32> to vector<1x1x1xf32>
    %32 = vector.extract %31[0, 0, 0] : f32 from vector<1x1x1xf32>
    %33 = vector.broadcast %3 : vector<1x128xf32> to vector<16x128xf32>
    %34 = arith.mulf %28, %33 : vector<16x128xf32>
    %35 = vector.shape_cast %34 : vector<16x128xf32> to vector<1x16x128xf32>
    %cst_21 = arith.constant dense<0.000000e+00> : vector<1xf32>
    %36 = vector.multi_reduction <add>, %35, %cst_21 [1, 2] : vector<1x16x128xf32> to vector<1xf32>
    %37 = vector.shape_cast %36 : vector<1xf32> to vector<1x1x1xf32>
    %38 = vector.extract %37[0, 0, 0] : f32 from vector<1x1x1xf32>
    %cst_22 = arith.constant 9.765625E-4 : f32
    %39 = arith.mulf %38, %cst_22 : f32
    %40 = arith.subf %32, %38 : f32
    %cst_23 = arith.constant 9.765625E-4 : f32
    %41 = arith.mulf %40, %cst_23 : f32
    %42 = vector.broadcast %39 : f32 to vector<1x128xf32>
    %43 = arith.mulf %42, %3 : vector<1x128xf32>
    %44 = vector.broadcast %41 : f32 to vector<1x128xf32>
    %45 = arith.mulf %44, %5 : vector<1x128xf32>
    %46 = arith.addf %43, %45 : vector<1x128xf32>
    %47 = vector.broadcast %46 : vector<1x128xf32> to vector<16x128xf32>
    %48 = arith.subf %28, %47 : vector<16x128xf32>
    %49 = arith.mulf %48, %48 : vector<16x128xf32>
    %50 = vector.shape_cast %49 : vector<16x128xf32> to vector<1x16x128xf32>
    %cst_24 = arith.constant dense<0.000000e+00> : vector<1xf32>
    %51 = vector.multi_reduction <add>, %50, %cst_24 [1, 2] : vector<1x16x128xf32> to vector<1xf32>
    %52 = vector.shape_cast %51 : vector<1xf32> to vector<1x1x1xf32>
    %53 = vector.extract %52[0, 0, 0] : f32 from vector<1x1x1xf32>
    %54 = vector.broadcast %3 : vector<1x128xf32> to vector<16x128xf32>
    %55 = arith.mulf %49, %54 : vector<16x128xf32>
    %56 = vector.shape_cast %55 : vector<16x128xf32> to vector<1x16x128xf32>
    %cst_25 = arith.constant dense<0.000000e+00> : vector<1xf32>
    %57 = vector.multi_reduction <add>, %56, %cst_25 [1, 2] : vector<1x16x128xf32> to vector<1xf32>
    %58 = vector.shape_cast %57 : vector<1xf32> to vector<1x1x1xf32>
    %59 = vector.extract %58[0, 0, 0] : f32 from vector<1x1x1xf32>
    %cst_26 = arith.constant 9.765625E-4 : f32
    %60 = arith.mulf %59, %cst_26 : f32
    %61 = arith.subf %53, %59 : f32
    %cst_27 = arith.constant 9.765625E-4 : f32
    %62 = arith.mulf %61, %cst_27 : f32
    %cst_28 = arith.constant 9.99999974E-6 : f32
    %63 = arith.addf %60, %cst_28 : f32
    %64 = math.rsqrt %63 : f32
    %65 = vector.broadcast %64 : f32 to vector<1x128xf32>
    %66 = arith.mulf %65, %3 : vector<1x128xf32>
    %cst_29 = arith.constant 9.99999974E-6 : f32
    %67 = arith.addf %62, %cst_29 : f32
    %68 = math.rsqrt %67 : f32
    %69 = vector.broadcast %68 : f32 to vector<1x128xf32>
    %70 = arith.mulf %69, %5 : vector<1x128xf32>
    %71 = arith.addf %66, %70 : vector<1x128xf32>
    %72 = arith.mulf %1, %71 : vector<1x128xf32>
    %73 = arith.mulf %46, %72 : vector<1x128xf32>
    %74 = arith.subf %2, %73 : vector<1x128xf32>
    %75 = vector.broadcast %72 : vector<1x128xf32> to vector<16x128xf32>
    %76 = arith.mulf %28, %75 : vector<16x128xf32>
    %77 = vector.broadcast %74 : vector<1x128xf32> to vector<16x128xf32>
    %78 = arith.addf %76, %77 : vector<16x128xf32>
    %cst_30 = arith.constant 0.000000e+00 : f32
    %79 = vector.broadcast %cst_30 : f32 to vector<16x128xf32>
    %80 = arith.cmpf ogt, %78, %79 : vector<16x128xf32>
    %cst_31 = arith.constant 2.000000e-01 : f32
    %81 = vector.broadcast %cst_31 : f32 to vector<16x128xf32>
    %82 = arith.mulf %81, %78 : vector<16x128xf32>
    %83 = arith.select %80, %78, %82 : vector<16x128xi1>, vector<16x128xf32>
    %c0_32 = arith.constant 0 : index
    %c0_33 = arith.constant 0 : index
    %c0_34 = arith.constant 0 : index
    %84 = vector.load %arg4[%c0_32, %c0_33, %c0_34] : memref<2x16x128xf32, #tpu.memory_space<vmem>>, vector<1x16x128xf32>
    %85 = vector.shape_cast %84 : vector<1x16x128xf32> to vector<16x128xf32>
    %86 = vector.shape_cast %83 : vector<16x128xf32> to vector<1x16x128xf32>
    tpu.vector_store %arg4[%c0_32, %c0_33, %c0_34], %86 {strides = array<i32>} : memref<2x16x128xf32, #tpu.memory_space<vmem>>, vector<1x16x128xf32>,
    %87 = vector.extract_strided_slice %27 {offsets = [16, 0], sizes = [16, 128], strides = [1, 1]} : vector<32x128xf32> to vector<16x128xf32>
    %88 = vector.shape_cast %87 : vector<16x128xf32> to vector<1x16x128xf32>
    %cst_35 = arith.constant dense<0.000000e+00> : vector<1xf32>
    %89 = vector.multi_reduction <add>, %88, %cst_35 [1, 2] : vector<1x16x128xf32> to vector<1xf32>
    %90 = vector.shape_cast %89 : vector<1xf32> to vector<1x1x1xf32>
    %91 = vector.extract %90[0, 0, 0] : f32 from vector<1x1x1xf32>
    %92 = vector.broadcast %3 : vector<1x128xf32> to vector<16x128xf32>
    %93 = arith.mulf %87, %92 : vector<16x128xf32>
    %94 = vector.shape_cast %93 : vector<16x128xf32> to vector<1x16x128xf32>
    %cst_36 = arith.constant dense<0.000000e+00> : vector<1xf32>
    %95 = vector.multi_reduction <add>, %94, %cst_36 [1, 2] : vector<1x16x128xf32> to vector<1xf32>
    %96 = vector.shape_cast %95 : vector<1xf32> to vector<1x1x1xf32>
    %97 = vector.extract %96[0, 0, 0] : f32 from vector<1x1x1xf32>
    %cst_37 = arith.constant 9.765625E-4 : f32
    %98 = arith.mulf %97, %cst_37 : f32
    %99 = arith.subf %91, %97 : f32
    %cst_38 = arith.constant 9.765625E-4 : f32
    %100 = arith.mulf %99, %cst_38 : f32
    %101 = vector.broadcast %98 : f32 to vector<1x128xf32>
    %102 = arith.mulf %101, %3 : vector<1x128xf32>
    %103 = vector.broadcast %100 : f32 to vector<1x128xf32>
    %104 = arith.mulf %103, %5 : vector<1x128xf32>
    %105 = arith.addf %102, %104 : vector<1x128xf32>
    %106 = vector.broadcast %105 : vector<1x128xf32> to vector<16x128xf32>
    %107 = arith.subf %87, %106 : vector<16x128xf32>
    %108 = arith.mulf %107, %107 : vector<16x128xf32>
    %109 = vector.shape_cast %108 : vector<16x128xf32> to vector<1x16x128xf32>
    %cst_39 = arith.constant dense<0.000000e+00> : vector<1xf32>
    %110 = vector.multi_reduction <add>, %109, %cst_39 [1, 2] : vector<1x16x128xf32> to vector<1xf32>
    %111 = vector.shape_cast %110 : vector<1xf32> to vector<1x1x1xf32>
    %112 = vector.extract %111[0, 0, 0] : f32 from vector<1x1x1xf32>
    %113 = vector.broadcast %3 : vector<1x128xf32> to vector<16x128xf32>
    %114 = arith.mulf %108, %113 : vector<16x128xf32>
    %115 = vector.shape_cast %114 : vector<16x128xf32> to vector<1x16x128xf32>
    %cst_40 = arith.constant dense<0.000000e+00> : vector<1xf32>
    %116 = vector.multi_reduction <add>, %115, %cst_40 [1, 2] : vector<1x16x128xf32> to vector<1xf32>
    %117 = vector.shape_cast %116 : vector<1xf32> to vector<1x1x1xf32>
    %118 = vector.extract %117[0, 0, 0] : f32 from vector<1x1x1xf32>
    %cst_41 = arith.constant 9.765625E-4 : f32
    %119 = arith.mulf %118, %cst_41 : f32
    %120 = arith.subf %112, %118 : f32
    %cst_42 = arith.constant 9.765625E-4 : f32
    %121 = arith.mulf %120, %cst_42 : f32
    %cst_43 = arith.constant 9.99999974E-6 : f32
    %122 = arith.addf %119, %cst_43 : f32
    %123 = math.rsqrt %122 : f32
    %124 = vector.broadcast %123 : f32 to vector<1x128xf32>
    %125 = arith.mulf %124, %3 : vector<1x128xf32>
    %cst_44 = arith.constant 9.99999974E-6 : f32
    %126 = arith.addf %121, %cst_44 : f32
    %127 = math.rsqrt %126 : f32
    %128 = vector.broadcast %127 : f32 to vector<1x128xf32>
    %129 = arith.mulf %128, %5 : vector<1x128xf32>
    %130 = arith.addf %125, %129 : vector<1x128xf32>
    %131 = arith.mulf %1, %130 : vector<1x128xf32>
    %132 = arith.mulf %105, %131 : vector<1x128xf32>
    %133 = arith.subf %2, %132 : vector<1x128xf32>
    %134 = vector.broadcast %131 : vector<1x128xf32> to vector<16x128xf32>
    %135 = arith.mulf %87, %134 : vector<16x128xf32>
    %136 = vector.broadcast %133 : vector<1x128xf32> to vector<16x128xf32>
    %137 = arith.addf %135, %136 : vector<16x128xf32>
    %cst_45 = arith.constant 0.000000e+00 : f32
    %138 = vector.broadcast %cst_45 : f32 to vector<16x128xf32>
    %139 = arith.cmpf ogt, %137, %138 : vector<16x128xf32>
    %cst_46 = arith.constant 2.000000e-01 : f32
    %140 = vector.broadcast %cst_46 : f32 to vector<16x128xf32>
    %141 = arith.mulf %140, %137 : vector<16x128xf32>
    %142 = arith.select %139, %137, %141 : vector<16x128xi1>, vector<16x128xf32>
    %c1_47 = arith.constant 1 : index
    %c0_48 = arith.constant 0 : index
    %c0_49 = arith.constant 0 : index
    %143 = vector.load %arg4[%c1_47, %c0_48, %c0_49] : memref<2x16x128xf32, #tpu.memory_space<vmem>>, vector<1x16x128xf32>
    %144 = vector.shape_cast %143 : vector<1x16x128xf32> to vector<16x128xf32>
    %145 = vector.shape_cast %142 : vector<16x128xf32> to vector<1x16x128xf32>
    tpu.vector_store %arg4[%c1_47, %c0_48, %c0_49], %145 {strides = array<i32>} : memref<2x16x128xf32, #tpu.memory_space<vmem>>, vector<1x16x128xf32>,
    return
  }
  func.func @transform_0(%arg0: i32) -> (i32, i32, i32) {
    %c0_i32 = arith.constant 0 : i32
    %c0_i32_0 = arith.constant 0 : i32
    %c0_i32_1 = arith.constant 0 : i32
    return %arg0, %c0_i32, %c0_i32_0 : i32, i32, i32
  }
  func.func @transform_1(%arg0: i32) -> (i32, i32, i32) {
    %c0_i32 = arith.constant 0 : i32
    %c0_i32_0 = arith.constant 0 : i32
    %c0_i32_1 = arith.constant 0 : i32
    %c0_i32_2 = arith.constant 0 : i32
    return %c0_i32, %c0_i32_0, %c0_i32_1 : i32, i32, i32
  }
  func.func @transform_2(%arg0: i32) -> (i32, i32) {
    %c0_i32 = arith.constant 0 : i32
    %c0_i32_0 = arith.constant 0 : i32
    %c0_i32_1 = arith.constant 0 : i32
    return %c0_i32, %c0_i32_0 : i32, i32
  }
  func.func @transform_3(%arg0: i32) -> (i32, i32, i32) {
    %c0_i32 = arith.constant 0 : i32
    %c0_i32_0 = arith.constant 0 : i32
    %c0_i32_1 = arith.constant 0 : i32
    return %arg0, %c0_i32, %c0_i32_0 : i32, i32, i32
  }
}

</mosaic_0001>

<llo_original>
// kernel: tpu_custom_call.1
$region0: #{tpu_custom_call.1}
  #allocation0 [shape = 'u32[]', space=smem, size = 0x4, offset = 0x4, fixed_abs, tag = 'smem constant byte address 0x4 - core index']
  #allocation1 [shape = 'u32[144,128]{1,0:T(1,128)}', space=vmem, size = 0x12000, scoped, tag = 'internal scratch']
  %s0 = inlined_call_operand.vmem [shape: f32[2,18,64], index: 0, kind: input, shape index: {}]
  %s1 = inlined_call_operand.hbm [shape: f32[3,64,128], index: 1, kind: input, shape index: {}]
  %s2 = inlined_call_operand.vmem [shape: f32[4,128], index: 2, kind: input, shape index: {}]
  %s3 = inlined_call_operand.hbm [shape: f32[2,16,128], index: 3, kind: output, shape index: {}]
  %s4 = sld [smem:[#allocation0]]
  $region26: #{tpu_custom_call.1} parent=0
    _
  %s6 = ssub.s32 1, %s4
  %s7 = scalar_select 0, %s6, %s4
  $region1: #{tpu_custom_call.1} parent=0
    #allocation2 [shape = 'u8[98304]{0}', space=vmem, size = 0x18000, scoped, tag = 'input window, operand 1, single buffered']
    #allocation3 [shape = 's32[1]{0}', space=sflag, size = 0x4, scoped, tag = 'scoped memory for tpu_custom_call.1']
    #allocation4 [shape = 's32[1]{0}', space=sflag, size = 0x4, scoped, tag = 'scoped memory for tpu_custom_call.1']
    #allocation5 [shape = 'u8[16384]{0}', space=vmem, size = 0x4000, scoped, tag = 'output window, operand 0, single buffered']
    %8 = vsyncpa [#allocation3], 0
    %9 = vsyncpa [#allocation4], 0
    // Predicated region
    $region2: #{tpu_custom_call.1} parent=1 // pred_check
      _
    $region3: #{tpu_custom_call.1} parent=1 // pred_check_branch
      %11 = sbr.rel (0) target = $region5
    $region4: #{tpu_custom_call.1} parent=1 // pred_region
      _
    $region5: #{tpu_custom_call.1} parent=1 // pred_fallthru
      _
    // Predicated region
    $region6: #{tpu_custom_call.1} parent=1 // pred_check
      _
    $region7: #{tpu_custom_call.1} parent=1 // pred_check_branch
      %13 = sbr.rel (0) target = $region9
    $region8: #{tpu_custom_call.1} parent=1 // pred_region
      %s15 = ssub.s32 3072, 3072
      %16 = vsyncadd [#allocation3], %s15
      %s17 = sshll.u32 [#allocation2], 4
      %s18 = int_to_ptr.vmem [resolvable:$true] %s17
      %23 = dma.hbm_to_vmem [thread:$0]  %s1, 3072, %s18, [#allocation3], 128, 128, 8
    $region9: #{tpu_custom_call.1} parent=1 // pred_fallthru
      _
    // Predicated region
    $region10: #{tpu_custom_call.1} parent=1 // pred_check
      _
    $region11: #{tpu_custom_call.1} parent=1 // pred_check_branch
      %25 = sbr.rel (0) target = $region13
    $region12: #{tpu_custom_call.1} parent=1 // pred_region
      _
    $region13: #{tpu_custom_call.1} parent=1 // pred_fallthru
      _
    // Predicated region
    $region14: #{tpu_custom_call.1} parent=1 // pred_check
      _
    $region15: #{tpu_custom_call.1} parent=1 // pred_check_branch
      %27 = sbr.rel (0) target = $region17
    $region16: #{tpu_custom_call.1} parent=1 // pred_region
      %28 = dma.done [#allocation3], 3072
    $region17: #{tpu_custom_call.1} parent=1 // pred_fallthru
      _
    %v29 = vld [vmem:[%s2] sm:$0x1]
    %v30 = vld [vmem:[%s2 + $0x1] sm:$0x1]
    %v31 = vld [vmem:[%s2 + $0x2] sm:$0x1]
    %v32 = vld [vmem:[%s2 + $0x3] sm:$0x1]
    %v33 = vsub.f32 1.0, %v32
    %v34 = vld [vmem:[%s0] sm:$0xff]
    %v35 = vld [vmem:[%s0 + $0x8] sm:$0xff]
    %v36 = vld [vmem:[%s0 + $0x10] sm:$0x3]
    %v37 = vld [vmem:[%s0 + $0x18] sm:$0xff]
    %v38 = vld [vmem:[%s0 + $0x20] sm:$0xff]
    %v39 = vld [vmem:[%s0 + $0x28] sm:$0x3]
    %v40 = vld [vmem:[#allocation2] sm:$0xff]
    %v41 = vld [vmem:[#allocation2 + $0x8] sm:$0xff]
    %v42 = vld [vmem:[#allocation2 + $0x10] sm:$0xff]
    %v43 = vld [vmem:[#allocation2 + $0x18] sm:$0xff]
    %v44 = vld [vmem:[#allocation2 + $0x20] sm:$0xff]
    %v45 = vld [vmem:[#allocation2 + $0x28] sm:$0xff]
    %v46 = vld [vmem:[#allocation2 + $0x30] sm:$0xff]
    %v47 = vld [vmem:[#allocation2 + $0x38] sm:$0xff]
    %vm54 = vcmask 1046528
    %v55 = vrot.slane %v34, 1
    %v56 = vrot.slane %v35, 1
    %v57 = vsel %vm54, %v55, %v56
    %v58 = vrot.slane %v36, 1
    %v59 = vsel %vm54, %v56, %v58
    %v60 = vrot.slane %v37, 1
    %v61 = vrot.slane %v38, 1
    %v62 = vsel %vm54, %v60, %v61
    %v63 = vrot.slane %v39, 1
    %v64 = vsel %vm54, %v61, %v63
    %s65 = scalar_lea.vmem [#allocation2], 64
    %v66 = vld [vmem:[%s65] sm:$0xff]
    %v67 = vld [vmem:[%s65 + $0x8] sm:$0xff]
    %v68 = vld [vmem:[%s65 + $0x10] sm:$0xff]
    %v69 = vld [vmem:[%s65 + $0x18] sm:$0xff]
    %v70 = vld [vmem:[%s65 + $0x20] sm:$0xff]
    %v71 = vld [vmem:[%s65 + $0x28] sm:$0xff]
    %v72 = vld [vmem:[%s65 + $0x30] sm:$0xff]
    %v73 = vld [vmem:[%s65 + $0x38] sm:$0xff]
    %vm74 = vcmask 523264
    %v75 = vsel %vm74, %v57, 0
    %v77 = vsel %vm74, %v59, 0
    %v79 = vsel %vm74, %v62, 0
    %v81 = vsel %vm74, %v64, 0
    %83 = vmatprep.subr.mxu0 0.0
    %84 = vmatpush1.msra.mxu0 %v66
    %85 = vmatprep.subr.mxu0 0.0
    %86 = vmatpush1.msra.mxu0 %v67
    %87 = vmatprep.subr.mxu0 0.0
    %88 = vmatpush1.msra.mxu0 %v68
    %89 = vmatprep.subr.mxu0 0.0
    %90 = vmatpush1.msra.mxu0 %v69
    %91 = vmatprep.subr.mxu0 0.0
    %92 = vmatpush1.msra.mxu0 %v70
    %93 = vmatprep.subr.mxu0 0.0
    %94 = vmatpush1.msra.mxu0 %v71
    %95 = vmatprep.subr.mxu0 0.0
    %96 = vmatpush1.msra.mxu0 %v72
    %97 = vmatprep.subr.mxu0 0.0
    %98 = vmatpush1.msra.mxu0 %v73
    %99 = vmatprep.subr.mxu0 0.0
    %100 = vmatpush1.msra.mxu0 0.0
    %101 = vmatprep.subr.mxu0 0.0
    %102 = vmatpush1.msra.mxu0 0.0
    %103 = vmatprep.subr.mxu0 0.0
    %104 = vmatpush1.msra.mxu0 0.0
    %105 = vmatprep.subr.mxu0 0.0
    %106 = vmatpush1.msra.mxu0 0.0
    %107 = vmatprep.subr.mxu0 0.0
    %108 = vmatpush1.msra.mxu0 0.0
    %109 = vmatprep.subr.mxu0 0.0
    %110 = vmatpush1.msra.mxu0 0.0
    %111 = vmatprep.subr.mxu0 0.0
    %112 = vmatpush1.msra.mxu0 0.0
    %113 = vmatprep.subr.mxu0 0.0
    %114 = vmatpush1.msra.mxu0 0.0
    %115 = vmatprep.subr.mxu0 0.0
    %116 = vmatpush1.msra.mxu0 0.0
    %117 = vmatprep.subr.mxu0 0.0
    %118 = vmatpush1.msra.mxu0 0.0
    %119 = vmatprep.subr.mxu0 0.0
    %120 = vmatpush1.msra.mxu0 0.0
    %121 = vmatprep.subr.mxu0 0.0
    %122 = vmatpush1.msra.mxu0 0.0
    %123 = vmatprep.subr.mxu0 0.0
    %124 = vmatpush1.msra.mxu0 0.0
    %125 = vmatprep.subr.mxu0 0.0
    %126 = vmatpush1.msra.mxu0 0.0
    %127 = vmatprep.subr.mxu0 0.0
    %128 = vmatpush1.msra.mxu0 0.0
    %129 = vmatprep.subr.mxu0 0.0
    %130 = vmatpush1.msra.mxu0 0.0
    %131 = vmatprep.subr.mxu0 0.0
    %132 = vmatpush1.msra.mxu0 0.0
    %133 = vmatprep.subr.mxu0 0.0
    %134 = vmatpush1.msra.mxu0 0.0
    %135 = vmatprep.subr.mxu0 0.0
    %136 = vmatpush1.msra.mxu0 0.0
    %137 = vmatprep.subr.mxu0 0.0
    %138 = vmatpush1.msra.mxu0 0.0
    %139 = vmatprep.subr.mxu0 0.0
    %140 = vmatpush1.msra.mxu0 0.0
    %141 = vmatprep.subr.mxu0 0.0
    %142 = vmatpush1.msra.mxu0 0.0
    %143 = vmatprep.subr.mxu0 0.0
    %144 = vmatpush1.msra.mxu0 0.0
    %145 = vmatprep.subr.mxu0 0.0
    %146 = vmatpush1.msra.mxu0 0.0
    %147 = vmatprep.mubr.f32.mxu0 0.0
    %148 = vmatmul.mubr.f32.gmra.mrb[0].mxu0 %v75
    %v149 = vpop.f32.mrb[0].mxu0
    %v150 = vadd.f32 0.0, %v149
    %v151 = vpop.f32.mrb[0].mxu0
    %152 = vmatprep.mubr.f32.mxu0 0.0
    %153 = vmatmul.mubr.f32.gmra.mrb[0].mxu0 %v77
    %v154 = vpop.f32.mrb[0].mxu0
    %v155 = vadd.f32 0.0, %v154
    %v156 = vpop.f32.mrb[0].mxu0
    %157 = vmatprep.mubr.f32.mxu0 0.0
    %158 = vmatmul.mubr.f32.gmra.mrb[0].mxu0 %v79
    %v159 = vpop.f32.mrb[0].mxu0
    %v160 = vadd.f32 0.0, %v159
    %v161 = vpop.f32.mrb[0].mxu0
    %162 = vmatprep.mubr.f32.mxu0 0.0
    %163 = vmatmul.mubr.f32.gmra.mrb[0].mxu0 %v81
    %v164 = vpop.f32.mrb[0].mxu0
    %v165 = vadd.f32 0.0, %v164
    %v166 = vpop.f32.mrb[0].mxu0
    %167 = vdwg.mxu0
    %v168 = vsel %vm74, %v34, 0
    %v170 = vsel %vm74, %v35, 0
    %v172 = vsel %vm74, %v37, 0
    %v174 = vsel %vm74, %v38, 0
    %176 = vmatprep.subr.mxu0 0.0
    %177 = vmatpush1.msra.mxu0 %v40
    %178 = vmatprep.subr.mxu0 0.0
    %179 = vmatpush1.msra.mxu0 %v41
    %180 = vmatprep.subr.mxu0 0.0
    %181 = vmatpush1.msra.mxu0 %v42
    %182 = vmatprep.subr.mxu0 0.0
    %183 = vmatpush1.msra.mxu0 %v43
    %184 = vmatprep.subr.mxu0 0.0
    %185 = vmatpush1.msra.mxu0 %v44
    %186 = vmatprep.subr.mxu0 0.0
    %187 = vmatpush1.msra.mxu0 %v45
    %188 = vmatprep.subr.mxu0 0.0
    %189 = vmatpush1.msra.mxu0 %v46
    %190 = vmatprep.subr.mxu0 0.0
    %191 = vmatpush1.msra.mxu0 %v47
    %192 = vmatprep.subr.mxu0 0.0
    %193 = vmatpush1.msra.mxu0 0.0
    %194 = vmatprep.subr.mxu0 0.0
    %195 = vmatpush1.msra.mxu0 0.0
    %196 = vmatprep.subr.mxu0 0.0
    %197 = vmatpush1.msra.mxu0 0.0
    %198 = vmatprep.subr.mxu0 0.0
    %199 = vmatpush1.msra.mxu0 0.0
    %200 = vmatprep.subr.mxu0 0.0
    %201 = vmatpush1.msra.mxu0 0.0
    %202 = vmatprep.subr.mxu0 0.0
    %203 = vmatpush1.msra.mxu0 0.0
    %204 = vmatprep.subr.mxu0 0.0
    %205 = vmatpush1.msra.mxu0 0.0
    %206 = vmatprep.subr.mxu0 0.0
    %207 = vmatpush1.msra.mxu0 0.0
    %208 = vmatprep.subr.mxu0 0.0
    %209 = vmatpush1.msra.mxu0 0.0
    %210 = vmatprep.subr.mxu0 0.0
    %211 = vmatpush1.msra.mxu0 0.0
    %212 = vmatprep.subr.mxu0 0.0
    %213 = vmatpush1.msra.mxu0 0.0
    %214 = vmatprep.subr.mxu0 0.0
    %215 = vmatpush1.msra.mxu0 0.0
    %216 = vmatprep.subr.mxu0 0.0
    %217 = vmatpush1.msra.mxu0 0.0
    %218 = vmatprep.subr.mxu0 0.0
    %219 = vmatpush1.msra.mxu0 0.0
    %220 = vmatprep.subr.mxu0 0.0
    %221 = vmatpush1.msra.mxu0 0.0
    %222 = vmatprep.subr.mxu0 0.0
    %223 = vmatpush1.msra.mxu0 0.0
    %224 = vmatprep.subr.mxu0 0.0
    %225 = vmatpush1.msra.mxu0 0.0
    %226 = vmatprep.subr.mxu0 0.0
    %227 = vmatpush1.msra.mxu0 0.0
    %228 = vmatprep.subr.mxu0 0.0
    %229 = vmatpush1.msra.mxu0 0.0
    %230 = vmatprep.subr.mxu0 0.0
    %231 = vmatpush1.msra.mxu0 0.0
    %232 = vmatprep.subr.mxu0 0.0
    %233 = vmatpush1.msra.mxu0 0.0
    %234 = vmatprep.subr.mxu0 0.0
    %235 = vmatpush1.msra.mxu0 0.0
    %236 = vmatprep.subr.mxu0 0.0
    %237 = vmatpush1.msra.mxu0 0.0
    %238 = vmatprep.subr.mxu0 0.0
    %239 = vmatpush1.msra.mxu0 0.0
    %240 = vmatprep.mubr.f32.mxu0 0.0
    %241 = vmatmul.mubr.f32.gmra.mrb[0].mxu0 %v168
    %v242 = vpop.f32.mrb[0].mxu0
    %v243 = vadd.f32 %v150, %v242
    %v244 = vpop.f32.mrb[0].mxu0
    %245 = vmatprep.mubr.f32.mxu0 0.0
    %246 = vmatmul.mubr.f32.gmra.mrb[0].mxu0 %v170
    %v247 = vpop.f32.mrb[0].mxu0
    %v248 = vadd.f32 %v155, %v247
    %v249 = vpop.f32.mrb[0].mxu0
    %250 = vmatprep.mubr.f32.mxu0 0.0
    %251 = vmatmul.mubr.f32.gmra.mrb[0].mxu0 %v172
    %v252 = vpop.f32.mrb[0].mxu0
    %v253 = vadd.f32 %v160, %v252
    %v254 = vpop.f32.mrb[0].mxu0
    %255 = vmatprep.mubr.f32.mxu0 0.0
    %256 = vmatmul.mubr.f32.gmra.mrb[0].mxu0 %v174
    %v257 = vpop.f32.mrb[0].mxu0
    %v258 = vadd.f32 %v165, %v257
    %v259 = vpop.f32.mrb[0].mxu0
    %260 = vdwg.mxu0
    %vm261 = vcmask 1045504
    %v262 = vrot.slane %v34, 2
    %v263 = vrot.slane %v35, 2
    %v264 = vsel %vm261, %v262, %v263
    %v265 = vrot.slane %v36, 2
    %v266 = vsel %vm261, %v263, %v265
    %v267 = vrot.slane %v37, 2
    %v268 = vrot.slane %v38, 2
    %v269 = vsel %vm261, %v267, %v268
    %v270 = vrot.slane %v39, 2
    %v271 = vsel %vm261, %v268, %v270
    %s272 = scalar_lea.vmem [#allocation2], 128
    %v273 = vld [vmem:[%s272] sm:$0xff]
    %v274 = vld [vmem:[%s272 + $0x8] sm:$0xff]
    %v275 = vld [vmem:[%s272 + $0x10] sm:$0xff]
    %v276 = vld [vmem:[%s272 + $0x18] sm:$0xff]
    %v277 = vld [vmem:[%s272 + $0x20] sm:$0xff]
    %v278 = vld [vmem:[%s272 + $0x28] sm:$0xff]
    %v279 = vld [vmem:[%s272 + $0x30] sm:$0xff]
    %v280 = vld [vmem:[%s272 + $0x38] sm:$0xff]
    %v281 = vsel %vm74, %v264, 0
    %v283 = vsel %vm74, %v266, 0
    %v285 = vsel %vm74, %v269, 0
    %v287 = vsel %vm74, %v271, 0
    %289 = vmatprep.subr.mxu0 0.0
    %290 = vmatpush1.msra.mxu0 %v273
    %291 = vmatprep.subr.mxu0 0.0
    %292 = vmatpush1.msra.mxu0 %v274
    %293 = vmatprep.subr.mxu0 0.0
    %294 = vmatpush1.msra.mxu0 %v275
    %295 = vmatprep.subr.mxu0 0.0
    %296 = vmatpush1.msra.mxu0 %v276
    %297 = vmatprep.subr.mxu0 0.0
    %298 = vmatpush1.msra.mxu0 %v277
    %299 = vmatprep.subr.mxu0 0.0
    %300 = vmatpush1.msra.mxu0 %v278
    %301 = vmatprep.subr.mxu0 0.0
    %302 = vmatpush1.msra.mxu0 %v279
    %303 = vmatprep.subr.mxu0 0.0
    %304 = vmatpush1.msra.mxu0 %v280
    %305 = vmatprep.subr.mxu0 0.0
    %306 = vmatpush1.msra.mxu0 0.0
    %307 = vmatprep.subr.mxu0 0.0
    %308 = vmatpush1.msra.mxu0 0.0
    %309 = vmatprep.subr.mxu0 0.0
    %310 = vmatpush1.msra.mxu0 0.0
    %311 = vmatprep.subr.mxu0 0.0
    %312 = vmatpush1.msra.mxu0 0.0
    %313 = vmatprep.subr.mxu0 0.0
    %314 = vmatpush1.msra.mxu0 0.0
    %315 = vmatprep.subr.mxu0 0.0
    %316 = vmatpush1.msra.mxu0 0.0
    %317 = vmatprep.subr.mxu0 0.0
    %318 = vmatpush1.msra.mxu0 0.0
    %319 = vmatprep.subr.mxu0 0.0
    %320 = vmatpush1.msra.mxu0 0.0
    %321 = vmatprep.subr.mxu0 0.0
    %322 = vmatpush1.msra.mxu0 0.0
    %323 = vmatprep.subr.mxu0 0.0
    %324 = vmatpush1.msra.mxu0 0.0
    %325 = vmatprep.subr.mxu0 0.0
    %326 = vmatpush1.msra.mxu0 0.0
    %327 = vmatprep.subr.mxu0 0.0
    %328 = vmatpush1.msra.mxu0 0.0
    %329 = vmatprep.subr.mxu0 0.0
    %330 = vmatpush1.msra.mxu0 0.0
    %331 = vmatprep.subr.mxu0 0.0
    %332 = vmatpush1.msra.mxu0 0.0
    %333 = vmatprep.subr.mxu0 0.0
    %334 = vmatpush1.msra.mxu0 0.0
    %335 = vmatprep.subr.mxu0 0.0
    %336 = vmatpush1.msra.mxu0 0.0
    %337 = vmatprep.subr.mxu0 0.0
    %338 = vmatpush1.msra.mxu0 0.0
    %339 = vmatprep.subr.mxu0 0.0
    %340 = vmatpush1.msra.mxu0 0.0
    %341 = vmatprep.subr.mxu0 0.0
    %342 = vmatpush1.msra.mxu0 0.0
    %343 = vmatprep.subr.mxu0 0.0
    %344 = vmatpush1.msra.mxu0 0.0
    %345 = vmatprep.subr.mxu0 0.0
    %346 = vmatpush1.msra.mxu0 0.0
    %347 = vmatprep.subr.mxu0 0.0
    %348 = vmatpush1.msra.mxu0 0.0
    %349 = vmatprep.subr.mxu0 0.0
    %350 = vmatpush1.msra.mxu0 0.0
    %351 = vmatprep.subr.mxu0 0.0
    %352 = vmatpush1.msra.mxu0 0.0
    %353 = vmatprep.mubr.f32.mxu0 0.0
    %354 = vmatmul.mubr.f32.gmra.mrb[0].mxu0 %v281
    %v355 = vpop.f32.mrb[0].mxu0
    %v356 = vadd.f32 0.0, %v355
    %v357 = vpop.f32.mrb[0].mxu0
    %358 = vmatprep.mubr.f32.mxu0 0.0
    %359 = vmatmul.mubr.f32.gmra.mrb[0].mxu0 %v283
    %v360 = vpop.f32.mrb[0].mxu0
    %v361 = vadd.f32 0.0, %v360
    %v362 = vpop.f32.mrb[0].mxu0
    %363 = vmatprep.mubr.f32.mxu0 0.0
    %364 = vmatmul.mubr.f32.gmra.mrb[0].mxu0 %v285
    %v365 = vpop.f32.mrb[0].mxu0
    %v366 = vadd.f32 0.0, %v365
    %v367 = vpop.f32.mrb[0].mxu0
    %368 = vmatprep.mubr.f32.mxu0 0.0
    %369 = vmatmul.mubr.f32.gmra.mrb[0].mxu0 %v287
    %v370 = vpop.f32.mrb[0].mxu0
    %v371 = vadd.f32 0.0, %v370
    %v372 = vpop.f32.mrb[0].mxu0
    %373 = vdwg.mxu0
    %v374 = vadd.f32 %v243, %v356
    %v375 = vadd.f32 %v248, %v361
    %v376 = vadd.f32 %v253, %v366
    %v377 = vadd.f32 %v258, %v371
    %v378 = vlaneseq
    %v379 = vshrl.u32 %v378, 7
    %v380 = vsub.s32 0, %v379
    %v381 = vrot.slane %v29, %v380
    %v382 = vadd.f32 %v374, %v381
    %v383 = vadd.f32 %v375, %v381
    %v384 = vadd.f32 %v376, %v381
    %v385 = vadd.f32 %v377, %v381
    %v386 = vadd.f32 %v382, %v383
    %387 = vadd.xlane.f32.xlu0 %v386
    %v388 = vpop.xlane.xlu0 %387
    %v389 = vrot.slane %v388, 4
    %v390 = vadd.f32 %v388, %v389
    %v391 = vrot.slane %v390, 2
    %v392 = vadd.f32 %v390, %v391
    %v393 = vrot.slane %v392, 1
    %v394 = vadd.f32 %v392, %v393
    %s395 = vtos %v394
    %v396 = vlaneseq
    %v397 = vshrl.u32 %v396, 7
    %v398 = vsub.s32 0, %v397
    %v399 = vrot.slane %v32, %v398
    %v400 = vmul.f32 %v382, %v399
    %v401 = vmul.f32 %v383, %v399
    %v402 = vadd.f32 %v400, %v401
    %403 = vadd.xlane.f32.xlu0 %v402
    %v404 = vpop.xlane.xlu0 %403
    %v405 = vrot.slane %v404, 4
    %v406 = vadd.f32 %v404, %v405
    %v407 = vrot.slane %v406, 2
    %v408 = vadd.f32 %v406, %v407
    %v409 = vrot.slane %v408, 1
    %v410 = vadd.f32 %v408, %v409
    %s411 = vtos %v410
    %s412 = smul.f32 %s411, 0.0009765625
    %s413 = ssub.f32 %s395, %s411
    %s414 = smul.f32 %s413, 0.0009765625
    %v415 = vstv %s412
    %v416 = vmul.f32 %v415, %v32
    %v417 = vstv %s414
    %v418 = vmul.f32 %v417, %v33
    %v419 = vadd.f32 %v416, %v418
    %v420 = vlaneseq
    %v421 = vshrl.u32 %v420, 7
    %v422 = vsub.s32 0, %v421
    %v423 = vrot.slane %v419, %v422
    %v424 = vsub.f32 %v382, %v423
    %v425 = vsub.f32 %v383, %v423
    %v426 = vmul.f32 %v424, %v424
    %v427 = vmul.f32 %v425, %v425
    %v428 = vadd.f32 %v426, %v427
    %429 = vadd.xlane.f32.xlu0 %v428
    %v430 = vpop.xlane.xlu0 %429
    %v431 = vrot.slane %v430, 4
    %v432 = vadd.f32 %v430, %v431
    %v433 = vrot.slane %v432, 2
    %v434 = vadd.f32 %v432, %v433
    %v435 = vrot.slane %v434, 1
    %v436 = vadd.f32 %v434, %v435
    %s437 = vtos %v436
    %v438 = vmul.f32 %v426, %v399
    %v439 = vmul.f32 %v427, %v399
    %v440 = vadd.f32 %v438, %v439
    %441 = vadd.xlane.f32.xlu0 %v440
    %v442 = vpop.xlane.xlu0 %441
    %v443 = vrot.slane %v442, 4
    %v444 = vadd.f32 %v442, %v443
    %v445 = vrot.slane %v444, 2
    %v446 = vadd.f32 %v444, %v445
    %v447 = vrot.slane %v446, 1
    %v448 = vadd.f32 %v446, %v447
    %s449 = vtos %v448
    %s450 = smul.f32 %s449, 0.0009765625
    %s451 = ssub.f32 %s437, %s449
    %s452 = smul.f32 %s451, 0.0009765625
    %s453 = sadd.f32 %s450, 1e-05
    %v454 = vstv %s453
    %v455 = vrsqrt.pop %v454
    %s456 = vtos %v455
    %v457 = vstv %s456
    %v458 = vmul.f32 %v457, %v32
    %s459 = sadd.f32 %s452, 1e-05
    %v460 = vstv %s459
    %v461 = vrsqrt.pop %v460
    %s462 = vtos %v461
    %v463 = vstv %s462
    %v464 = vmul.f32 %v463, %v33
    %v465 = vadd.f32 %v458, %v464
    %v466 = vmul.f32 %v30, %v465
    %v467 = vmul.f32 %v419, %v466
    %v468 = vsub.f32 %v31, %v467
    %v469 = vlaneseq
    %v470 = vshrl.u32 %v469, 7
    %v471 = vsub.s32 0, %v470
    %v472 = vrot.slane %v466, %v471
    %v473 = vmul.f32 %v382, %v472
    %v474 = vmul.f32 %v383, %v472
    %v475 = vlaneseq
    %v476 = vshrl.u32 %v475, 7
    %v477 = vsub.s32 0, %v476
    %v478 = vrot.slane %v468, %v477
    %v479 = vadd.f32 %v473, %v478
    %v480 = vadd.f32 %v474, %v478
    %vm481 = vcmp.gt.f32.partialorder %v479, 0.0
    %vm482 = vcmp.gt.f32.partialorder %v480, 0.0
    %v483 = vmul.f32 %v479, 0.2
    %v484 = vmul.f32 %v480, 0.2
    %v485 = vsel %vm481, %v479, %v483
    %v486 = vsel %vm482, %v480, %v484
    %487 = vst [vmem:[#allocation5] sm:$0xff] %v485
    %488 = vst [vmem:[#allocation5 + $0x8] sm:$0xff] %v486
    %v489 = vadd.f32 %v384, %v385
    %490 = vadd.xlane.f32.xlu0 %v489
    %v491 = vpop.xlane.xlu0 %490
    %v492 = vrot.slane %v491, 4
    %v493 = vadd.f32 %v491, %v492
    %v494 = vrot.slane %v493, 2
    %v495 = vadd.f32 %v493, %v494
    %v496 = vrot.slane %v495, 1
    %v497 = vadd.f32 %v495, %v496
    %s498 = vtos %v497
    %v499 = vmul.f32 %v384, %v399
    %v500 = vmul.f32 %v385, %v399
    %v501 = vadd.f32 %v499, %v500
    %502 = vadd.xlane.f32.xlu0 %v501
    %v503 = vpop.xlane.xlu0 %502
    %v504 = vrot.slane %v503, 4
    %v505 = vadd.f32 %v503, %v504
    %v506 = vrot.slane %v505, 2
    %v507 = vadd.f32 %v505, %v506
    %v508 = vrot.slane %v507, 1
    %v509 = vadd.f32 %v507, %v508
    %s510 = vtos %v509
    %s511 = smul.f32 %s510, 0.0009765625
    %s512 = ssub.f32 %s498, %s510
    %s513 = smul.f32 %s512, 0.0009765625
    %v514 = vstv %s511
    %v515 = vmul.f32 %v514, %v32
    %v516 = vstv %s513
    %v517 = vmul.f32 %v516, %v33
    %v518 = vadd.f32 %v515, %v517
    %v519 = vlaneseq
    %v520 = vshrl.u32 %v519, 7
    %v521 = vsub.s32 0, %v520
    %v522 = vrot.slane %v518, %v521
    %v523 = vsub.f32 %v384, %v522
    %v524 = vsub.f32 %v385, %v522
    %v525 = vmul.f32 %v523, %v523
    %v526 = vmul.f32 %v524, %v524
    %v527 = vadd.f32 %v525, %v526
    %528 = vadd.xlane.f32.xlu0 %v527
    %v529 = vpop.xlane.xlu0 %528
    %v530 = vrot.slane %v529, 4
    %v531 = vadd.f32 %v529, %v530
    %v532 = vrot.slane %v531, 2
    %v533 = vadd.f32 %v531, %v532
    %v534 = vrot.slane %v533, 1
    %v535 = vadd.f32 %v533, %v534
    %s536 = vtos %v535
    %v537 = vmul.f32 %v525, %v399
    %v538 = vmul.f32 %v526, %v399
    %v539 = vadd.f32 %v537, %v538
    %540 = vadd.xlane.f32.xlu0 %v539
    %v541 = vpop.xlane.xlu0 %540
    %v542 = vrot.slane %v541, 4
    %v543 = vadd.f32 %v541, %v542
    %v544 = vrot.slane %v543, 2
    %v545 = vadd.f32 %v543, %v544
    %v546 = vrot.slane %v545, 1
    %v547 = vadd.f32 %v545, %v546
    %s548 = vtos %v547
    %s549 = smul.f32 %s548, 0.0009765625
    %s550 = ssub.f32 %s536, %s548
    %s551 = smul.f32 %s550, 0.0009765625
    %s552 = sadd.f32 %s549, 1e-05
    %v553 = vstv %s552
    %v554 = vrsqrt.pop %v553
    %s555 = vtos %v554
    %v556 = vstv %s555
    %v557 = vmul.f32 %v556, %v32
    %s558 = sadd.f32 %s551, 1e-05
    %v559 = vstv %s558
    %v560 = vrsqrt.pop %v559
    %s561 = vtos %v560
    %v562 = vstv %s561
    %v563 = vmul.f32 %v562, %v33
    %v564 = vadd.f32 %v557, %v563
    %v565 = vmul.f32 %v30, %v564
    %v566 = vmul.f32 %v518, %v565
    %v567 = vsub.f32 %v31, %v566
    %v568 = vlaneseq
    %v569 = vshrl.u32 %v568, 7
    %v570 = vsub.s32 0, %v569
    %v571 = vrot.slane %v565, %v570
    %v572 = vmul.f32 %v384, %v571
    %v573 = vmul.f32 %v385, %v571
    %v574 = vlaneseq
    %v575 = vshrl.u32 %v574, 7
    %v576 = vsub.s32 0, %v575
    %v577 = vrot.slane %v567, %v576
    %v578 = vadd.f32 %v572, %v577
    %v579 = vadd.f32 %v573, %v577
    %vm580 = vcmp.gt.f32.partialorder %v578, 0.0
    %vm581 = vcmp.gt.f32.partialorder %v579, 0.0
    %v582 = vmul.f32 %v578, 0.2
    %v583 = vmul.f32 %v579, 0.2
    %v584 = vsel %vm580, %v578, %v582
    %v585 = vsel %vm581, %v579, %v583
    %s586 = scalar_lea.vmem [#allocation5], 16
    %587 = vst [vmem:[%s586] sm:$0xff] %v584
    %588 = vst [vmem:[%s586 + $0x8] sm:$0xff] %v585
    // Predicated region
    $region18: #{tpu_custom_call.1} parent=1 // pred_check
      _
    $region19: #{tpu_custom_call.1} parent=1 // pred_check_branch
      %590 = sbr.rel (0) target = $region21
    $region20: #{tpu_custom_call.1} parent=1 // pred_region
      %s592 = ssub.s32 512, 512
      %593 = vsyncadd [#allocation4], %s592
      %s594 = sshll.u32 [#allocation5], 4
      %s595 = int_to_ptr.vmem [resolvable:$true] %s594
      %600 = dma.vmem_to_hbm [thread:$0]  %s595, 512, %s3, [#allocation4], 128, 128, 8
    $region21: #{tpu_custom_call.1} parent=1 // pred_fallthru
      _
    // Predicated region
    $region22: #{tpu_custom_call.1} parent=1 // pred_check
      _
    $region23: #{tpu_custom_call.1} parent=1 // pred_check_branch
      %602 = sbr.rel (0) target = $region25
    $region24: #{tpu_custom_call.1} parent=1 // pred_region
      %603 = dma.done [#allocation4], 512
    $region25: #{tpu_custom_call.1} parent=1 // pred_fallthru
      _
    %604 = vsyncpa [#allocation3], 1
    %605 = vsyncpa [#allocation4], 1

</llo_original>
